<compile_context>
chip_gen: v5e
topology: v5e:2x2
jax: 0.10.0
libtpu: 0.0.40
codegen_flags: <defaults>
</compile_context>

<pallas_src>
import functools

import jax
import jax.numpy as jnp
from jax.experimental import pallas as pl
from jax.experimental.pallas import tpu as pltpu


def _round_up(x, m):
    return (x + m - 1) // m * m


def unet_block_kernel(x_ref, w1_ref, b1_ref, w2_ref, b2_ref, o_ref, *, w_stride, l1, l2):
    # x_ref : (Cin_p, S_blk)       flattened, zero-padded group of samples
    #                              (channels on sublanes, flat spatial on lanes)
    # w1_ref: (Cout_p, 9*Cin_p)    column = (kh*3+kw)*Cin_p + c   (compute dtype)
    # b1_ref: (Cout_p, 1)          f32
    # w2_ref: (Cout_p, 9*Cout_p)
    # b2_ref: (Cout_p, 1)
    # o_ref : (Cout_p, l2)         valid data: per-sample rows < Ho, cols < Wo
    offs = [kh * w_stride + kw for kh in range(3) for kw in range(3)]  # tap-major
    xf = x_ref[...]

    # conv1: im2col along sublanes -> ONE matmul, K = 9*Cin_p (tile-aligned pieces)
    p1 = jnp.concatenate([xf[:, o:o + l1] for o in offs], axis=0)       # (9*Cin_p, l1)
    y1 = jax.lax.dot_general(w1_ref[...], p1, (((1,), (0,)), ((), ())),
                             preferred_element_type=jnp.float32)        # (Cout_p, l1)
    h1 = jnp.maximum(y1 + b1_ref[...], 0.0)                             # f32

    # conv2: im2col of h1 -> ONE matmul, K = 9*Cout_p
    h1c = h1.astype(x_ref.dtype)                                        # bf16 on v6e/v7x
    p2 = jnp.concatenate([h1c[:, o:o + l2] for o in offs], axis=0)      # (9*Cout_p, l2)
    y2 = jax.lax.dot_general(w2_ref[...], p2, (((1,), (0,)), ((), ())),
                             preferred_element_type=jnp.float32)        # (Cout_p, l2)
    o_ref[...] = jnp.maximum(y2 + b2_ref[...], 0.0).astype(o_ref.dtype)


def unet_block(x_nchw, w1, b1, w2, b2, samples_per_block=None,
               compute_dtype=jnp.float32):
    """Forward pass of UNETBlock (batchNorm=False, dropout=0.0, padding=0).

    x_nchw: (N, Cin, H, W); w1: (Cout, Cin, 3, 3); w2: (Cout, Cout, 3, 3) (PyTorch OIHW).
    Returns (N, Cout, H-4, W-4).
    compute_dtype: jnp.float32 (exact-ish) or jnp.bfloat16 (recommended on v6e/v7x).
    """
    N, Cin, H, W = x_nchw.shape
    Cout = w1.shape[0]
    assert H >= 5 and W >= 5
    Ho, Wo = H - 4, W - 4

    cbytes = jnp.dtype(compute_dtype).itemsize
    obytes = jnp.dtype(x_nchw.dtype).itemsize
    sub = 32 // cbytes                       # sublane tile rows: f32 -> 8, bf16 -> 16
    Cin_p = _round_up(Cin, sub)              # tile-aligned im2col pieces
    Cout_p = _round_up(Cout, sub)
    halo = 2 * W + 2                         # flat reach of a 3x3 window at row stride W

    def blk_dims(bb):
        l2 = _round_up(bb * H * W, 128)      # conv2 flat output lanes (lane-dense store)
        l1 = _round_up(l2 + halo, 128)       # conv1 flat output lanes
        s_blk = _round_up(l1 + halo, 128)    # padded flat input lanes per block
        return l2, l1, s_blk

    def vmem_bytes(bb):
        l2, l1, s_blk = blk_dims(bb)
        io = 2 * (Cin_p * s_blk * cbytes + Cout_p * l2 * obytes)       # double-buffered
        wts = 2 * (Cout_p * 9 * Cin_p + Cout_p * 9 * Cout_p) * cbytes + 4 * Cout_p * 4
        tmp = (9 * Cin_p * l1 + 9 * Cout_p * l2) * cbytes \
            + (Cout_p * l1 + Cout_p * l2) * 4                          # im2col + acc temps
        return io + wts + tmp

    budget = 40 * 2**20                      # conservative vs v7x's 64 MiB physical VMEM
    if samples_per_block is None:
        # Largest sample group that still leaves >=2 "parallel" grid steps (both v7x
        # TensorCores busy) and fits the VMEM budget.
        samples_per_block = 1
        for d in sorted((d for d in range(1, N + 1) if N % d == 0), reverse=True):
            if (N == 1 or N // d >= 2) and vmem_bytes(d) <= budget:
                samples_per_block = d
                break
    bb = samples_per_block
    assert N % bb == 0
    G = N // bb
    L2, L1, S_blk = blk_dims(bb)

    # Input: (N, Cin, H, W) -> (Cin_p, G*S_blk). One tiny one-time HBM transpose +
    # zero-pad; channels padded to the sublane tile, each block's flat spatial padded
    # to S_blk (the pad only feeds discarded output rows/cols).
    xt = jnp.transpose(x_nchw, (1, 0, 2, 3)).reshape(Cin, G, bb * H * W)
    xt = jnp.pad(xt, ((0, Cin_p - Cin), (0, 0), (0, S_blk - bb * H * W)))
    xf = xt.reshape(Cin_p, G * S_blk).astype(compute_dtype)

    # Weights: OIHW -> (Cout_p, 9*Cin_p), column = (kh*3+kw)*Cin_p + c, zero-padded
    # channels matching the tile-aligned im2col row order built inside the kernel.
    w1t = jnp.transpose(w1, (0, 2, 3, 1))                               # (Cout,3,3,Cin)
    w1t = jnp.pad(w1t, ((0, Cout_p - Cout), (0, 0), (0, 0), (0, Cin_p - Cin)))
    w1r = w1t.reshape(Cout_p, 9 * Cin_p).astype(compute_dtype)
    w2t = jnp.transpose(w2, (0, 2, 3, 1))                               # (Cout,3,3,Cout)
    w2t = jnp.pad(w2t, ((0, Cout_p - Cout), (0, 0), (0, 0), (0, Cout_p - Cout)))
    w2r = w2t.reshape(Cout_p, 9 * Cout_p).astype(compute_dtype)
    b1r = jnp.pad(b1, (0, Cout_p - Cout)).reshape(Cout_p, 1).astype(jnp.float32)
    b2r = jnp.pad(b2, (0, Cout_p - Cout)).reshape(Cout_p, 1).astype(jnp.float32)

    kernel = functools.partial(unet_block_kernel, w_stride=W, l1=L1, l2=L2)
    vmem_limit = int(min(max(2 * vmem_bytes(bb), 32 * 2**20), 48 * 2**20))

    # Weight/bias specs are grid-invariant (index_map returns (0,0) for every step), so
    # Pallas keeps the same resident block and does not re-DMA them across steps.
    out_flat = pl.pallas_call(
        kernel,
        out_shape=jax.ShapeDtypeStruct((Cout_p, G * L2), x_nchw.dtype),
        grid_spec=pltpu.PrefetchScalarGridSpec(
            num_scalar_prefetch=0,
            grid=(G,),
            in_specs=[
                pl.BlockSpec((Cin_p, S_blk), lambda g: (0, g)),
                pl.BlockSpec((Cout_p, 9 * Cin_p), lambda g: (0, 0)),
                pl.BlockSpec((Cout_p, 1), lambda g: (0, 0)),
                pl.BlockSpec((Cout_p, 9 * Cout_p), lambda g: (0, 0)),
                pl.BlockSpec((Cout_p, 1), lambda g: (0, 0)),
            ],
            out_specs=pl.BlockSpec((Cout_p, L2), lambda g: (0, g)),
        ),
        compiler_params=pltpu.CompilerParams(
            dimension_semantics=("parallel",),
            vmem_limit_bytes=vmem_limit,
        ),
    )(xf, w1r, b1r, w2r, b2r)

    # (Cout_p, G*L2) -> (N, Cout, Ho, Wo): drop lane padding, un-flatten, one tiny
    # transpose back to NCHW, trim padded channels and the wrap-around rows/cols.
    out = out_flat.reshape(Cout_p, G, L2)[:, :, :bb * H * W]
    out = out.reshape(Cout_p, N, H, W)
    out = jnp.transpose(out, (1, 0, 2, 3))
    return out[:, :Cout, :Ho, :Wo]


def init_params(key, ch_in, ch_out):
    """Deterministic init mimicking PyTorch Conv2d defaults (PyTorch OIHW layout)."""
    k1, k2, k3, k4 = jax.random.split(key, 4)
    bnd1 = 1.0 / jnp.sqrt(ch_in * 9)
    bnd2 = 1.0 / jnp.sqrt(ch_out * 9)
    w1 = jax.random.uniform(k1, (ch_out, ch_in, 3, 3), jnp.float32, -bnd1, bnd1)
    b1 = jax.random.uniform(k2, (ch_out,), jnp.float32, -bnd1, bnd1)
    w2 = jax.random.uniform(k3, (ch_out, ch_out, 3, 3), jnp.float32, -bnd2, bnd2)
    b2 = jax.random.uniform(k4, (ch_out,), jnp.float32, -bnd2, bnd2)
    return w1, b1, w2, b2


def _reference(x_nchw, w1, b1, w2, b2):
    """Pure-JAX reference (lax conv, NCHW/OIHW) for correctness check."""
    def conv(x, w, b):
        y = jax.lax.conv_general_dilated(
            x, w, window_strides=(1, 1), padding="VALID",
            dimension_numbers=("NCHW", "OIHW", "NCHW"))
        return jnp.maximum(y + b[None, :, None, None], 0.0)
    return conv(conv(x_nchw, w1, b1), w2, b2)


if __name__ == "__main__":
    key = jax.random.PRNGKey(0)
    kx, kp = jax.random.split(key)

    N, CH_IN, CH_OUT, H, W = 2, 4, 8, 16, 16
    x = jax.random.normal(kx, (N, CH_IN, H, W), jnp.float32)
    w1, b1, w2, b2 = init_params(kp, CH_IN, CH_OUT)

    out = jax.jit(unet_block)(x, w1, b1, w2, b2)
    out = jax.block_until_ready(out)

    ref = _reference(x, w1, b1, w2, b2)
    assert out.shape == (N, CH_OUT, H - 4, W - 4), out.shape
    max_err = float(jnp.max(jnp.abs(out - ref)))
    assert jnp.allclose(out, ref, atol=2e-5, rtol=2e-5), max_err

    print("KERNEL_OK")
</pallas_src>

<mosaic_0001>
module attributes {stable_mosaic.version = 11 : i64} {
  func.func @unet_block_kernel(%arg0: i32, %arg1: memref<8x512xf32, #tpu.memory_space<vmem>>, %arg2: memref<8x72xf32, #tpu.memory_space<vmem>>, %arg3: memref<8x1xf32, #tpu.memory_space<vmem>>, %arg4: memref<8x72xf32, #tpu.memory_space<vmem>>, %arg5: memref<8x1xf32, #tpu.memory_space<vmem>>, %arg6: memref<8x256xf32, #tpu.memory_space<vmem>>) attributes {dimension_semantics = [#tpu.dimension_semantics<parallel>], iteration_bounds = array<i64: 2>, scalar_prefetch = 0 : i64, scratch_operands = 0 : i64, tpu.core_type = #tpu.core_type<tc>, window_params = [{transform_indices = @transform_0, window_bounds = array<i64: 8, 512>}, {pipeline_mode = #tpu.pipeline_mode<synchronous>, transform_indices = @transform_1, window_bounds = array<i64: 8, 72>}, {pipeline_mode = #tpu.pipeline_mode<synchronous>, transform_indices = @transform_2, window_bounds = array<i64: 8, 1>}, {pipeline_mode = #tpu.pipeline_mode<synchronous>, transform_indices = @transform_3, window_bounds = array<i64: 8, 72>}, {pipeline_mode = #tpu.pipeline_mode<synchronous>, transform_indices = @transform_4, window_bounds = array<i64: 8, 1>}, {transform_indices = @transform_5, window_bounds = array<i64: 8, 256>}]} {
    %c0 = arith.constant 0 : index
    %c0_0 = arith.constant 0 : index
    %0 = vector.load %arg1[%c0, %c0_0] : memref<8x512xf32, #tpu.memory_space<vmem>>, vector<8x512xf32>
    %1 = vector.extract_strided_slice %0 {offsets = [0, 0], sizes = [8, 384], strides = [1, 1]} : vector<8x512xf32> to vector<8x384xf32>
    %2 = vector.extract_strided_slice %0 {offsets = [0, 1], sizes = [8, 384], strides = [1, 1]} : vector<8x512xf32> to vector<8x384xf32>
    %3 = vector.extract_strided_slice %0 {offsets = [0, 2], sizes = [8, 384], strides = [1, 1]} : vector<8x512xf32> to vector<8x384xf32>
    %4 = vector.extract_strided_slice %0 {offsets = [0, 16], sizes = [8, 384], strides = [1, 1]} : vector<8x512xf32> to vector<8x384xf32>
    %5 = vector.extract_strided_slice %0 {offsets = [0, 17], sizes = [8, 384], strides = [1, 1]} : vector<8x512xf32> to vector<8x384xf32>
    %6 = vector.extract_strided_slice %0 {offsets = [0, 18], sizes = [8, 384], strides = [1, 1]} : vector<8x512xf32> to vector<8x384xf32>
    %7 = vector.extract_strided_slice %0 {offsets = [0, 32], sizes = [8, 384], strides = [1, 1]} : vector<8x512xf32> to vector<8x384xf32>
    %8 = vector.extract_strided_slice %0 {offsets = [0, 33], sizes = [8, 384], strides = [1, 1]} : vector<8x512xf32> to vector<8x384xf32>
    %9 = vector.extract_strided_slice %0 {offsets = [0, 34], sizes = [8, 384], strides = [1, 1]} : vector<8x512xf32> to vector<8x384xf32>
    %10 = tpu.concatenate %1, %2, %3, %4, %5, %6, %7, %8, %9 in 0 : vector<8x384xf32>, vector<8x384xf32>, vector<8x384xf32>, vector<8x384xf32>, vector<8x384xf32>, vector<8x384xf32>, vector<8x384xf32>, vector<8x384xf32>, vector<8x384xf32> -> vector<72x384xf32>
    %c0_1 = arith.constant 0 : index
    %c0_2 = arith.constant 0 : index
    %11 = vector.load %arg2[%c0_1, %c0_2] : memref<8x72xf32, #tpu.memory_space<vmem>>, vector<8x72xf32>
    %cst = arith.constant dense<0.000000e+00> : vector<8x384xf32>
    %12 = tpu.matmul %11, %10, %cst {dimension_numbers = #tpu.dot_dimension_numbers<[1], [0], [0], [1], [0, 0, 1, 1], [], []>} : vector<8x72xf32>, vector<72x384xf32>, vector<8x384xf32> -> vector<8x384xf32>
    %c0_3 = arith.constant 0 : index
    %c0_4 = arith.constant 0 : index
    %13 = vector.load %arg3[%c0_3, %c0_4] : memref<8x1xf32, #tpu.memory_space<vmem>>, vector<8x1xf32>
    %14 = vector.broadcast %13 : vector<8x1xf32> to vector<8x384xf32>
    %15 = arith.addf %12, %14 : vector<8x384xf32>
    %cst_5 = arith.constant 0.000000e+00 : f32
    %16 = vector.broadcast %cst_5 : f32 to vector<8x384xf32>
    %17 = arith.maximumf %15, %16 : vector<8x384xf32>
    %18 = vector.extract_strided_slice %17 {offsets = [0, 0], sizes = [8, 256], strides = [1, 1]} : vector<8x384xf32> to vector<8x256xf32>
    %19 = vector.extract_strided_slice %17 {offsets = [0, 1], sizes = [8, 256], strides = [1, 1]} : vector<8x384xf32> to vector<8x256xf32>
    %20 = vector.extract_strided_slice %17 {offsets = [0, 2], sizes = [8, 256], strides = [1, 1]} : vector<8x384xf32> to vector<8x256xf32>
    %21 = vector.extract_strided_slice %17 {offsets = [0, 16], sizes = [8, 256], strides = [1, 1]} : vector<8x384xf32> to vector<8x256xf32>
    %22 = vector.extract_strided_slice %17 {offsets = [0, 17], sizes = [8, 256], strides = [1, 1]} : vector<8x384xf32> to vector<8x256xf32>
    %23 = vector.extract_strided_slice %17 {offsets = [0, 18], sizes = [8, 256], strides = [1, 1]} : vector<8x384xf32> to vector<8x256xf32>
    %24 = vector.extract_strided_slice %17 {offsets = [0, 32], sizes = [8, 256], strides = [1, 1]} : vector<8x384xf32> to vector<8x256xf32>
    %25 = vector.extract_strided_slice %17 {offsets = [0, 33], sizes = [8, 256], strides = [1, 1]} : vector<8x384xf32> to vector<8x256xf32>
    %26 = vector.extract_strided_slice %17 {offsets = [0, 34], sizes = [8, 256], strides = [1, 1]} : vector<8x384xf32> to vector<8x256xf32>
    %27 = tpu.concatenate %18, %19, %20, %21, %22, %23, %24, %25, %26 in 0 : vector<8x256xf32>, vector<8x256xf32>, vector<8x256xf32>, vector<8x256xf32>, vector<8x256xf32>, vector<8x256xf32>, vector<8x256xf32>, vector<8x256xf32>, vector<8x256xf32> -> vector<72x256xf32>
    %c0_6 = arith.constant 0 : index
    %c0_7 = arith.constant 0 : index
    %28 = vector.load %arg4[%c0_6, %c0_7] : memref<8x72xf32, #tpu.memory_space<vmem>>, vector<8x72xf32>
    %cst_8 = arith.constant dense<0.000000e+00> : vector<8x256xf32>
    %29 = tpu.matmul %28, %27, %cst_8 {dimension_numbers = #tpu.dot_dimension_numbers<[1], [0], [0], [1], [0, 0, 1, 1], [], []>} : vector<8x72xf32>, vector<72x256xf32>, vector<8x256xf32> -> vector<8x256xf32>
    %c0_9 = arith.constant 0 : index
    %c0_10 = arith.constant 0 : index
    %30 = vector.load %arg5[%c0_9, %c0_10] : memref<8x1xf32, #tpu.memory_space<vmem>>, vector<8x1xf32>
    %31 = vector.broadcast %30 : vector<8x1xf32> to vector<8x256xf32>
    %32 = arith.addf %29, %31 : vector<8x256xf32>
    %cst_11 = arith.constant 0.000000e+00 : f32
    %33 = vector.broadcast %cst_11 : f32 to vector<8x256xf32>
    %34 = arith.maximumf %32, %33 : vector<8x256xf32>
    %c0_12 = arith.constant 0 : index
    %c0_13 = arith.constant 0 : index
    %35 = vector.load %arg6[%c0_12, %c0_13] : memref<8x256xf32, #tpu.memory_space<vmem>>, vector<8x256xf32>
    tpu.vector_store %arg6[%c0_12, %c0_13], %34 {strides = array<i32>} : memref<8x256xf32, #tpu.memory_space<vmem>>, vector<8x256xf32>,
    return
  }
  func.func @transform_0(%arg0: i32) -> (i32, i32) {
    %c0_i32 = arith.constant 0 : i32
    %c0_i32_0 = arith.constant 0 : i32
    return %c0_i32, %arg0 : i32, i32
  }
  func.func @transform_1(%arg0: i32) -> (i32, i32) {
    %c0_i32 = arith.constant 0 : i32
    %c0_i32_0 = arith.constant 0 : i32
    %c0_i32_1 = arith.constant 0 : i32
    return %c0_i32, %c0_i32_0 : i32, i32
  }
  func.func @transform_2(%arg0: i32) -> (i32, i32) {
    %c0_i32 = arith.constant 0 : i32
    %c0_i32_0 = arith.constant 0 : i32
    %c0_i32_1 = arith.constant 0 : i32
    return %c0_i32, %c0_i32_0 : i32, i32
  }
  func.func @transform_3(%arg0: i32) -> (i32, i32) {
    %c0_i32 = arith.constant 0 : i32
    %c0_i32_0 = arith.constant 0 : i32
    %c0_i32_1 = arith.constant 0 : i32
    return %c0_i32, %c0_i32_0 : i32, i32
  }
  func.func @transform_4(%arg0: i32) -> (i32, i32) {
    %c0_i32 = arith.constant 0 : i32
    %c0_i32_0 = arith.constant 0 : i32
    %c0_i32_1 = arith.constant 0 : i32
    return %c0_i32, %c0_i32_0 : i32, i32
  }
  func.func @transform_5(%arg0: i32) -> (i32, i32) {
    %c0_i32 = arith.constant 0 : i32
    %c0_i32_0 = arith.constant 0 : i32
    return %c0_i32, %arg0 : i32, i32
  }
}

</mosaic_0001>

<llo_original>
// kernel: unet_block.1
$region0: #{unet_block.1}
  #allocation0 [shape = 'u32[]', space=smem, size = 0x4, offset = 0x4, fixed_abs, tag = 'smem constant byte address 0x4 - core index']
  #allocation1 [shape = 'u32[72,128]{1,0:T(1,128)}', space=vmem, size = 0x9000, scoped, tag = 'internal scratch']
  %s0 = inlined_call_operand.vmem [shape: f32[8,1024], index: 0, kind: input, shape index: {}]
  %s1 = inlined_call_operand.vmem [shape: f32[8,72], index: 1, kind: input, shape index: {}]
  %s2 = inlined_call_operand.vmem [shape: f32[8,1], index: 2, kind: input, shape index: {}]
  %s3 = inlined_call_operand.vmem [shape: f32[8,72], index: 3, kind: input, shape index: {}]
  %s4 = inlined_call_operand.vmem [shape: f32[8,1], index: 4, kind: input, shape index: {}]
  %s5 = inlined_call_operand.vmem [shape: f32[8,512], index: 5, kind: output, shape index: {}]
  %s6 = sld [smem:[#allocation0]]
  $region53: #{unet_block.1} parent=0
    _
  %s8 = ssub.s32 1, %s6
  %s9 = scalar_select 0, %s8, %s6
  loop: start=0, step=1, limit=4
  $region2: #{unet_block.1} parent=0 // loop_pre_header
    _
  $region3: #{unet_block.1} parent=0 // loop_header
    %s11 = sphi 0, %s15
    %p12 = scmp.ge.s32.totalorder %s11, 4
    %s21 = sphi 0, %s23
    %s24 = sphi 0, %s21
    %s25 = sphi 0, %s24
    %s41 = sphi 0, %s25
    %s45 = sphi 0, %s45
    %s47 = sphi 0, %s45
    %s48 = sphi 0, %s47
    %s62 = sphi 0, %s48
    %s66 = sphi 0, %s66
    %s68 = sphi 0, %s66
    %s69 = sphi 0, %s68
    %s83 = sphi 0, %s69
    %s87 = sphi 0, %s87
    %s89 = sphi 0, %s87
    %s90 = sphi 0, %s89
    %s104 = sphi 0, %s90
    %s108 = sphi 0, %s108
    %s110 = sphi 0, %s108
    %s111 = sphi 0, %s110
    %s125 = sphi 0, %s111
    %s131 = sphi 0, %s133
    %s134 = sphi 0, %s131
    %s135 = sphi 0, %s134
    %s151 = sphi 0, %s135
  $region4: #{unet_block.1} parent=0 // loop_header_branch
    %14 = sbr.rel (%p12) target = $region8
  $region5: #{unet_block.1} parent=0 // loop_body
    %s16 = ssub.s32 %s11, 1
    %s17 = ssub.s32 %s11, 2
    %s18 = sadd.s32 %s11, 1
    %s19 = ssub.s32 %s11, %s18
    %p20 = scmp.eq.s32.totalorder %s19, 0
    %s22 = sadd.s32 %s21, 1
    %s23 = scalar_select %p20, %s21, %s22
    %p26 = pneg %p20
    %p27 = scmp.eq.s32.totalorder %s11, 1
    %p28 = por %p26, %p27
    %p29 = scmp.ne.s32.totalorder %s21, %s24
    %p30 = scmp.eq.s32.totalorder %s11, 0
    %p31 = por %p29, %p30
    %p32 = scmp.ne.s32.totalorder %s21, %s24
    %p33 = scmp.eq.s32.totalorder %s16, 1
    %p34 = por %p32, %p33
    %p35 = scmp.ne.s32.totalorder %s24, %s25
    %p36 = scmp.eq.s32.totalorder %s16, 0
    %p37 = por %p35, %p36
    %p38 = scmp.ne.s32.totalorder %s24, %s25
    %p39 = scmp.eq.s32.totalorder %s17, 1
    %p40 = por %p38, %p39
    %p42 = scmp.ne.s32.totalorder %s25, %s41
    %p43 = scmp.eq.s32.totalorder %s17, 0
    %p44 = por %p42, %p43
    %s46 = sadd.s32 %s45, 1
    %p49 = scmp.eq.s32.totalorder %s11, 1
    %p50 = scmp.ne.s32.totalorder %s45, %s47
    %p51 = scmp.eq.s32.totalorder %s11, 0
    %p52 = por %p50, %p51
    %p53 = scmp.ne.s32.totalorder %s45, %s47
    %p54 = scmp.eq.s32.totalorder %s16, 1
    %p55 = por %p53, %p54
    %p56 = scmp.ne.s32.totalorder %s47, %s48
    %p57 = scmp.eq.s32.totalorder %s16, 0
    %p58 = por %p56, %p57
    %p59 = scmp.ne.s32.totalorder %s47, %s48
    %p60 = scmp.eq.s32.totalorder %s17, 1
    %p61 = por %p59, %p60
    %p63 = scmp.ne.s32.totalorder %s48, %s62
    %p64 = scmp.eq.s32.totalorder %s17, 0
    %p65 = por %p63, %p64
    %s67 = sadd.s32 %s66, 1
    %p70 = scmp.eq.s32.totalorder %s11, 1
    %p71 = scmp.ne.s32.totalorder %s66, %s68
    %p72 = scmp.eq.s32.totalorder %s11, 0
    %p73 = por %p71, %p72
    %p74 = scmp.ne.s32.totalorder %s66, %s68
    %p75 = scmp.eq.s32.totalorder %s16, 1
    %p76 = por %p74, %p75
    %p77 = scmp.ne.s32.totalorder %s68, %s69
    %p78 = scmp.eq.s32.totalorder %s16, 0
    %p79 = por %p77, %p78
    %p80 = scmp.ne.s32.totalorder %s68, %s69
    %p81 = scmp.eq.s32.totalorder %s17, 1
    %p82 = por %p80, %p81
    %p84 = scmp.ne.s32.totalorder %s69, %s83
    %p85 = scmp.eq.s32.totalorder %s17, 0
    %p86 = por %p84, %p85
    %s88 = sadd.s32 %s87, 1
    %p91 = scmp.eq.s32.totalorder %s11, 1
    %p92 = scmp.ne.s32.totalorder %s87, %s89
    %p93 = scmp.eq.s32.totalorder %s11, 0
    %p94 = por %p92, %p93
    %p95 = scmp.ne.s32.totalorder %s87, %s89
    %p96 = scmp.eq.s32.totalorder %s16, 1
    %p97 = por %p95, %p96
    %p98 = scmp.ne.s32.totalorder %s89, %s90
    %p99 = scmp.eq.s32.totalorder %s16, 0
    %p100 = por %p98, %p99
    %p101 = scmp.ne.s32.totalorder %s89, %s90
    %p102 = scmp.eq.s32.totalorder %s17, 1
    %p103 = por %p101, %p102
    %p105 = scmp.ne.s32.totalorder %s90, %s104
    %p106 = scmp.eq.s32.totalorder %s17, 0
    %p107 = por %p105, %p106
    %s109 = sadd.s32 %s108, 1
    %p112 = scmp.eq.s32.totalorder %s11, 1
    %p113 = scmp.ne.s32.totalorder %s108, %s110
    %p114 = scmp.eq.s32.totalorder %s11, 0
    %p115 = por %p113, %p114
    %p116 = scmp.ne.s32.totalorder %s108, %s110
    %p117 = scmp.eq.s32.totalorder %s16, 1
    %p118 = por %p116, %p117
    %p119 = scmp.ne.s32.totalorder %s110, %s111
    %p120 = scmp.eq.s32.totalorder %s16, 0
    %p121 = por %p119, %p120
    %p122 = scmp.ne.s32.totalorder %s110, %s111
    %p123 = scmp.eq.s32.totalorder %s17, 1
    %p124 = por %p122, %p123
    %p126 = scmp.ne.s32.totalorder %s111, %s125
    %p127 = scmp.eq.s32.totalorder %s17, 0
    %p128 = por %p126, %p127
    %s129 = ssub.s32 %s11, %s18
    %p130 = scmp.eq.s32.totalorder %s129, 0
    %s132 = sadd.s32 %s131, 1
    %s133 = scalar_select %p130, %s131, %s132
    %p136 = pneg %p130
    %p137 = scmp.eq.s32.totalorder %s11, 1
    %p138 = por %p136, %p137
    %p139 = scmp.ne.s32.totalorder %s131, %s134
    %p140 = scmp.eq.s32.totalorder %s11, 0
    %p141 = por %p139, %p140
    %p142 = scmp.ne.s32.totalorder %s131, %s134
    %p143 = scmp.eq.s32.totalorder %s16, 1
    %p144 = por %p142, %p143
    %p145 = scmp.ne.s32.totalorder %s134, %s135
    %p146 = scmp.eq.s32.totalorder %s16, 0
    %p147 = por %p145, %p146
    %p148 = scmp.ne.s32.totalorder %s134, %s135
    %p149 = scmp.eq.s32.totalorder %s17, 1
    %p150 = por %p148, %p149
    %p152 = scmp.ne.s32.totalorder %s135, %s151
    %p153 = scmp.eq.s32.totalorder %s17, 0
    %p154 = por %p152, %p153
    %p155 = scmp.le.s32.totalorder 1, %s11
    %p156 = scmp.lt.s32.totalorder %s11, 3
    %p157 = pnand %p155, %p156
    %p158 = pneg %p157
    // Predicated region
    $region9: #{unet_block.1} parent=5 // pred_check
      _
    $region10: #{unet_block.1} parent=5 // pred_check_branch
      %160 = sbr.rel (%p157) target = $region12
    $region11: #{unet_block.1} parent=5 // pred_region
      %s161 = ssub.s32 %s11, 1
      // Predicated region
      $region13: #{unet_block.1} parent=11 // pred_check
        %p162 = pneg %p58
      $region14: #{unet_block.1} parent=11 // pred_check_branch
        %164 = sbr.rel (%p162) target = $region16
      $region15: #{unet_block.1} parent=11 // pred_region
        _
      $region16: #{unet_block.1} parent=11 // pred_fallthru
        _
      // Predicated region
      $region17: #{unet_block.1} parent=11 // pred_check
        %p165 = pneg %p79
      $region18: #{unet_block.1} parent=11 // pred_check_branch
        %167 = sbr.rel (%p165) target = $region20
      $region19: #{unet_block.1} parent=11 // pred_region
        _
      $region20: #{unet_block.1} parent=11 // pred_fallthru
        _
      // Predicated region
      $region21: #{unet_block.1} parent=11 // pred_check
        %p168 = pneg %p100
      $region22: #{unet_block.1} parent=11 // pred_check_branch
        %170 = sbr.rel (%p168) target = $region24
      $region23: #{unet_block.1} parent=11 // pred_region
        _
      $region24: #{unet_block.1} parent=11 // pred_fallthru
        _
      // Predicated region
      $region25: #{unet_block.1} parent=11 // pred_check
        %p171 = pneg %p121
      $region26: #{unet_block.1} parent=11 // pred_check_branch
        %173 = sbr.rel (%p171) target = $region28
      $region27: #{unet_block.1} parent=11 // pred_region
        _
      $region28: #{unet_block.1} parent=11 // pred_fallthru
        _
    $region12: #{unet_block.1} parent=5 // pred_fallthru
      _
    %p174 = scmp.lt.s32.totalorder %s11, 2
    // Predicated region
    $region29: #{unet_block.1} parent=5 // pred_check
      %p175 = pneg %p174
    $region30: #{unet_block.1} parent=5 // pred_check_branch
      %177 = sbr.rel (%p175) target = $region32
    $region31: #{unet_block.1} parent=5 // pred_region
      // Predicated region
      $region33: #{unet_block.1} parent=31 // pred_check
        %p178 = pneg %p31
      $region34: #{unet_block.1} parent=31 // pred_check_branch
        %180 = sbr.rel (%p178) target = $region36
      $region35: #{unet_block.1} parent=31 // pred_region
        %s181 = smul.u32 4, %s11
        %p182 = scmp.lt.s32.totalorder %s181, 7
        %s183 = scalar_select %p182, %s181, 7
        %s184 = smul.addr %s183, 8
        %s185 = scalar_lea.vmem %s0, %s184
        %s186 = smul.u32 4, %s11
      $region36: #{unet_block.1} parent=31 // pred_fallthru
        _
    $region32: #{unet_block.1} parent=5 // pred_fallthru
      _
    %p187 = scmp.le.s32.totalorder 1, %s11
    %p188 = scmp.lt.s32.totalorder %s11, 3
    %p189 = pnand %p187, %p188
    %p190 = pneg %p189
    // Predicated region
    $region37: #{unet_block.1} parent=5 // pred_check
      _
    $region38: #{unet_block.1} parent=5 // pred_check_branch
      %192 = sbr.rel (%p189) target = $region40
    $region39: #{unet_block.1} parent=5 // pred_region
      %s193 = ssub.s32 %s11, 1
      %s194 = smul.u32 4, %s16
      %p195 = scmp.lt.s32.totalorder %s194, 7
      %s196 = scalar_select %p195, %s194, 7
      %s197 = smul.addr %s196, 8
      %s198 = scalar_lea.vmem %s0, %s197
      %p199 = pneg %p37
      %p200 = pneg %p34
      %p201 = pneg %p58
      %p202 = pneg %p55
      %p203 = pneg %p79
      %p204 = pneg %p76
      %p205 = pneg %p100
      %p206 = pneg %p97
      %p207 = pneg %p121
      %p208 = pneg %p118
      %p209 = pneg %p147
      %p210 = pneg %p144
      %s211 = smul.u32 2, %s16
      %p212 = scmp.lt.s32.totalorder %s211, 3
      %s213 = scalar_select %p212, %s211, 3
      %s214 = smul.addr %s213, 8
      %s215 = scalar_lea.vmem %s5, %s214
      %s216 = smul.u32 4, %s16
      %p217 = scmp.lt.s32.totalorder %s216, 7
      %s218 = scalar_select %p217, %s216, 7
      %s219 = smul.addr %s218, 8
      %s220 = scalar_lea.vmem %s0, %s219
      %s221 = smul.u32 4, %s16
      %s222 = smul.u32 2, %s16
      %p223 = scmp.lt.s32.totalorder %s222, 3
      %s224 = scalar_select %p223, %s222, 3
      %s225 = smul.addr %s224, 8
      %s226 = scalar_lea.vmem %s5, %s225
      %s227 = smul.u32 2, %s16
      %v228 = vld [vmem:[%s220] sm:$0xff]
      %v229 = vld [vmem:[%s220 + $0x8] sm:$0xff]
      %v230 = vld [vmem:[%s220 + $0x10] sm:$0xff]
      %v231 = vld [vmem:[%s220 + $0x18] sm:$0xff]
      %236 = vrot.lane.b32.xlu0 %v228, 127
      %v237 = vpop.permute.xlu0 %236
      %238 = vrot.lane.b32.xlu0 %v229, 127
      %v239 = vpop.permute.xlu0 %238
      %240 = vrot.lane.b32.xlu0 %v230, 127
      %v241 = vpop.permute.xlu0 %240
      %242 = vrot.lane.b32.xlu0 %v231, 127
      %v243 = vpop.permute.xlu0 %242
      %vm244 = vcmask 1039360
      %v245 = vsel %vm244, %v237, %v239
      %v246 = vsel %vm244, %v239, %v241
      %v247 = vsel %vm244, %v241, %v243
      %251 = vrot.lane.b32.xlu0 %v228, 126
      %v252 = vpop.permute.xlu0 %251
      %253 = vrot.lane.b32.xlu0 %v229, 126
      %v254 = vpop.permute.xlu0 %253
      %255 = vrot.lane.b32.xlu0 %v230, 126
      %v256 = vpop.permute.xlu0 %255
      %257 = vrot.lane.b32.xlu0 %v231, 126
      %v258 = vpop.permute.xlu0 %257
      %vm259 = vcmask 1031168
      %v260 = vsel %vm259, %v252, %v254
      %v261 = vsel %vm259, %v254, %v256
      %v262 = vsel %vm259, %v256, %v258
      %266 = vrot.lane.b32.xlu0 %v228, 112
      %v267 = vpop.permute.xlu0 %266
      %268 = vrot.lane.b32.xlu0 %v229, 112
      %v269 = vpop.permute.xlu0 %268
      %270 = vrot.lane.b32.xlu0 %v230, 112
      %v271 = vpop.permute.xlu0 %270
      %272 = vrot.lane.b32.xlu0 %v231, 112
      %v273 = vpop.permute.xlu0 %272
      %vm274 = vcmask 916480
      %v275 = vsel %vm274, %v267, %v269
      %v276 = vsel %vm274, %v269, %v271
      %v277 = vsel %vm274, %v271, %v273
      %281 = vrot.lane.b32.xlu0 %v228, 111
      %v282 = vpop.permute.xlu0 %281
      %283 = vrot.lane.b32.xlu0 %v229, 111
      %v284 = vpop.permute.xlu0 %283
      %285 = vrot.lane.b32.xlu0 %v230, 111
      %v286 = vpop.permute.xlu0 %285
      %287 = vrot.lane.b32.xlu0 %v231, 111
      %v288 = vpop.permute.xlu0 %287
      %vm289 = vcmask 908288
      %v290 = vsel %vm289, %v282, %v284
      %v291 = vsel %vm289, %v284, %v286
      %v292 = vsel %vm289, %v286, %v288
      %296 = vrot.lane.b32.xlu0 %v228, 110
      %v297 = vpop.permute.xlu0 %296
      %298 = vrot.lane.b32.xlu0 %v229, 110
      %v299 = vpop.permute.xlu0 %298
      %300 = vrot.lane.b32.xlu0 %v230, 110
      %v301 = vpop.permute.xlu0 %300
      %302 = vrot.lane.b32.xlu0 %v231, 110
      %v303 = vpop.permute.xlu0 %302
      %vm304 = vcmask 900096
      %v305 = vsel %vm304, %v297, %v299
      %v306 = vsel %vm304, %v299, %v301
      %v307 = vsel %vm304, %v301, %v303
      %311 = vrot.lane.b32.xlu0 %v228, 96
      %v312 = vpop.permute.xlu0 %311
      %313 = vrot.lane.b32.xlu0 %v229, 96
      %v314 = vpop.permute.xlu0 %313
      %315 = vrot.lane.b32.xlu0 %v230, 96
      %v316 = vpop.permute.xlu0 %315
      %317 = vrot.lane.b32.xlu0 %v231, 96
      %v318 = vpop.permute.xlu0 %317
      %vm319 = vcmask 785408
      %v320 = vsel %vm319, %v312, %v314
      %v321 = vsel %vm319, %v314, %v316
      %v322 = vsel %vm319, %v316, %v318
      %326 = vrot.lane.b32.xlu0 %v228, 95
      %v327 = vpop.permute.xlu0 %326
      %328 = vrot.lane.b32.xlu0 %v229, 95
      %v329 = vpop.permute.xlu0 %328
      %330 = vrot.lane.b32.xlu0 %v230, 95
      %v331 = vpop.permute.xlu0 %330
      %332 = vrot.lane.b32.xlu0 %v231, 95
      %v333 = vpop.permute.xlu0 %332
      %vm334 = vcmask 777216
      %v335 = vsel %vm334, %v327, %v329
      %v336 = vsel %vm334, %v329, %v331
      %v337 = vsel %vm334, %v331, %v333
      %341 = vrot.lane.b32.xlu0 %v228, 94
      %v342 = vpop.permute.xlu0 %341
      %343 = vrot.lane.b32.xlu0 %v229, 94
      %v344 = vpop.permute.xlu0 %343
      %345 = vrot.lane.b32.xlu0 %v230, 94
      %v346 = vpop.permute.xlu0 %345
      %347 = vrot.lane.b32.xlu0 %v231, 94
      %v348 = vpop.permute.xlu0 %347
      %vm349 = vcmask 769024
      %v350 = vsel %vm349, %v342, %v344
      %v351 = vsel %vm349, %v344, %v346
      %v352 = vsel %vm349, %v346, %v348
      %v356 = vld [vmem:[%s1] sm:$0xff]
      %v357 = vld [vmem:[%s2] sm:$0xff]
      %359 = vset.pattern.permute.xlu0 0
      %360 = vperm.xlu0 %359, %v357
      %v361 = vpop.permute.xlu0 %360
      %vm363 = vcmask 588800
      %v365 = vsel %vm363, %v356, 0
      %367 = vmatpush.msra.mxu0 0.0
      %368 = vmatpush.msra.mxu0 0.0
      %369 = vmatpush.msra.mxu0 0.0
      %370 = vmatpush.msra.mxu0 0.0
      %371 = vmatpush.msra.mxu0 0.0
      %372 = vmatpush.msra.mxu0 0.0
      %373 = vmatpush.msra.mxu0 0.0
      %374 = vmatpush.msra.mxu0 %v350
      %375 = vmatpush.msra.mxu0 %v335
      %376 = vmatpush.msra.mxu0 %v320
      %377 = vmatpush.msra.mxu0 %v305
      %378 = vmatpush.msra.mxu0 %v290
      %379 = vmatpush.msra.mxu0 %v275
      %380 = vmatpush.msra.mxu0 %v260
      %381 = vmatpush.msra.mxu0 %v245
      %382 = vmatpush.msra.mxu0 %v228
      %383 = vmatmul.f32.gmra.mxu0 %v365
      %v384 = vpop.f32.mrf.mxu0
      %v385 = vadd.f32 %v361, %v384
      %386 = vdwg.mxu0
      %387 = vmatpush.msra.mxu0 0.0
      %388 = vmatpush.msra.mxu0 0.0
      %389 = vmatpush.msra.mxu0 0.0
      %390 = vmatpush.msra.mxu0 0.0
      %391 = vmatpush.msra.mxu0 0.0
      %392 = vmatpush.msra.mxu0 0.0
      %393 = vmatpush.msra.mxu0 0.0
      %394 = vmatpush.msra.mxu0 %v351
      %395 = vmatpush.msra.mxu0 %v336
      %396 = vmatpush.msra.mxu0 %v321
      %397 = vmatpush.msra.mxu0 %v306
      %398 = vmatpush.msra.mxu0 %v291
      %399 = vmatpush.msra.mxu0 %v276
      %400 = vmatpush.msra.mxu0 %v261
      %401 = vmatpush.msra.mxu0 %v246
      %402 = vmatpush.msra.mxu0 %v229
      %403 = vmatmul.f32.gmra.mxu0 %v365
      %v404 = vpop.f32.mrf.mxu0
      %v405 = vadd.f32 %v361, %v404
      %406 = vdwg.mxu0
      %407 = vmatpush.msra.mxu0 0.0
      %408 = vmatpush.msra.mxu0 0.0
      %409 = vmatpush.msra.mxu0 0.0
      %410 = vmatpush.msra.mxu0 0.0
      %411 = vmatpush.msra.mxu0 0.0
      %412 = vmatpush.msra.mxu0 0.0
      %413 = vmatpush.msra.mxu0 0.0
      %414 = vmatpush.msra.mxu0 %v352
      %415 = vmatpush.msra.mxu0 %v337
      %416 = vmatpush.msra.mxu0 %v322
      %417 = vmatpush.msra.mxu0 %v307
      %418 = vmatpush.msra.mxu0 %v292
      %419 = vmatpush.msra.mxu0 %v277
      %420 = vmatpush.msra.mxu0 %v262
      %421 = vmatpush.msra.mxu0 %v247
      %422 = vmatpush.msra.mxu0 %v230
      %423 = vmatmul.f32.gmra.mxu0 %v365
      %v424 = vpop.f32.mrf.mxu0
      %v425 = vadd.f32 %v361, %v424
      %426 = vdwg.mxu0
      %v427 = vmax.f32 %v385, 0.0
      %v428 = vmax.f32 %v405, 0.0
      %v429 = vmax.f32 %v425, 0.0
      %433 = vrot.lane.b32.xlu0 %v427, 127
      %v434 = vpop.permute.xlu0 %433
      %435 = vrot.lane.b32.xlu0 %v428, 127
      %v436 = vpop.permute.xlu0 %435
      %437 = vrot.lane.b32.xlu0 %v429, 127
      %v438 = vpop.permute.xlu0 %437
      %v439 = vsel %vm244, %v434, %v436
      %v440 = vsel %vm244, %v436, %v438
      %443 = vrot.lane.b32.xlu0 %v427, 126
      %v444 = vpop.permute.xlu0 %443
      %445 = vrot.lane.b32.xlu0 %v428, 126
      %v446 = vpop.permute.xlu0 %445
      %447 = vrot.lane.b32.xlu0 %v429, 126
      %v448 = vpop.permute.xlu0 %447
      %v449 = vsel %vm259, %v444, %v446
      %v450 = vsel %vm259, %v446, %v448
      %453 = vrot.lane.b32.xlu0 %v427, 112
      %v454 = vpop.permute.xlu0 %453
      %455 = vrot.lane.b32.xlu0 %v428, 112
      %v456 = vpop.permute.xlu0 %455
      %457 = vrot.lane.b32.xlu0 %v429, 112
      %v458 = vpop.permute.xlu0 %457
      %v459 = vsel %vm274, %v454, %v456
      %v460 = vsel %vm274, %v456, %v458
      %463 = vrot.lane.b32.xlu0 %v427, 111
      %v464 = vpop.permute.xlu0 %463
      %465 = vrot.lane.b32.xlu0 %v428, 111
      %v466 = vpop.permute.xlu0 %465
      %467 = vrot.lane.b32.xlu0 %v429, 111
      %v468 = vpop.permute.xlu0 %467
      %v469 = vsel %vm289, %v464, %v466
      %v470 = vsel %vm289, %v466, %v468
      %473 = vrot.lane.b32.xlu0 %v427, 110
      %v474 = vpop.permute.xlu0 %473
      %475 = vrot.lane.b32.xlu0 %v428, 110
      %v476 = vpop.permute.xlu0 %475
      %477 = vrot.lane.b32.xlu0 %v429, 110
      %v478 = vpop.permute.xlu0 %477
      %v479 = vsel %vm304, %v474, %v476
      %v480 = vsel %vm304, %v476, %v478
      %483 = vrot.lane.b32.xlu0 %v427, 96
      %v484 = vpop.permute.xlu0 %483
      %485 = vrot.lane.b32.xlu0 %v428, 96
      %v486 = vpop.permute.xlu0 %485
      %487 = vrot.lane.b32.xlu0 %v429, 96
      %v488 = vpop.permute.xlu0 %487
      %v489 = vsel %vm319, %v484, %v486
      %v490 = vsel %vm319, %v486, %v488
      %493 = vrot.lane.b32.xlu0 %v427, 95
      %v494 = vpop.permute.xlu0 %493
      %495 = vrot.lane.b32.xlu0 %v428, 95
      %v496 = vpop.permute.xlu0 %495
      %497 = vrot.lane.b32.xlu0 %v429, 95
      %v498 = vpop.permute.xlu0 %497
      %v499 = vsel %vm334, %v494, %v496
      %v500 = vsel %vm334, %v496, %v498
      %503 = vrot.lane.b32.xlu0 %v427, 94
      %v504 = vpop.permute.xlu0 %503
      %505 = vrot.lane.b32.xlu0 %v428, 94
      %v506 = vpop.permute.xlu0 %505
      %507 = vrot.lane.b32.xlu0 %v429, 94
      %v508 = vpop.permute.xlu0 %507
      %v509 = vsel %vm349, %v504, %v506
      %v510 = vsel %vm349, %v506, %v508
      %v513 = vld [vmem:[%s3] sm:$0xff]
      %v514 = vld [vmem:[%s4] sm:$0xff]
      %516 = vset.pattern.permute.xlu0 0
      %517 = vperm.xlu0 %516, %v514
      %v518 = vpop.permute.xlu0 %517
      %v521 = vsel %vm363, %v513, 0
      %523 = vmatpush.msra.mxu0 0.0
      %524 = vmatpush.msra.mxu0 0.0
      %525 = vmatpush.msra.mxu0 0.0
      %526 = vmatpush.msra.mxu0 0.0
      %527 = vmatpush.msra.mxu0 0.0
      %528 = vmatpush.msra.mxu0 0.0
      %529 = vmatpush.msra.mxu0 0.0
      %530 = vmatpush.msra.mxu0 %v509
      %531 = vmatpush.msra.mxu0 %v499
      %532 = vmatpush.msra.mxu0 %v489
      %533 = vmatpush.msra.mxu0 %v479
      %534 = vmatpush.msra.mxu0 %v469
      %535 = vmatpush.msra.mxu0 %v459
      %536 = vmatpush.msra.mxu0 %v449
      %537 = vmatpush.msra.mxu0 %v439
      %538 = vmatpush.msra.mxu0 %v427
      %539 = vmatmul.f32.gmra.mxu0 %v521
      %v540 = vpop.f32.mrf.mxu0
      %v541 = vadd.f32 %v518, %v540
      %542 = vdwg.mxu0
      %543 = vmatpush.msra.mxu0 0.0
      %544 = vmatpush.msra.mxu0 0.0
      %545 = vmatpush.msra.mxu0 0.0
      %546 = vmatpush.msra.mxu0 0.0
      %547 = vmatpush.msra.mxu0 0.0
      %548 = vmatpush.msra.mxu0 0.0
      %549 = vmatpush.msra.mxu0 0.0
      %550 = vmatpush.msra.mxu0 %v510
      %551 = vmatpush.msra.mxu0 %v500
      %552 = vmatpush.msra.mxu0 %v490
      %553 = vmatpush.msra.mxu0 %v480
      %554 = vmatpush.msra.mxu0 %v470
      %555 = vmatpush.msra.mxu0 %v460
      %556 = vmatpush.msra.mxu0 %v450
      %557 = vmatpush.msra.mxu0 %v440
      %558 = vmatpush.msra.mxu0 %v428
      %559 = vmatmul.f32.gmra.mxu0 %v521
      %v560 = vpop.f32.mrf.mxu0
      %v561 = vadd.f32 %v518, %v560
      %562 = vdwg.mxu0
      %v563 = vmax.f32 %v541, 0.0
      %v564 = vmax.f32 %v561, 0.0
      %565 = vst [vmem:[%s226] sm:$0xff] %v563
      %566 = vst [vmem:[%s226 + $0x8] sm:$0xff] %v564
      %s567 = smul.u32 2, %s16
      %p568 = scmp.lt.s32.totalorder %s567, 3
      %s569 = scalar_select %p568, %s567, 3
      %s570 = smul.addr %s569, 8
      %s571 = scalar_lea.vmem %s5, %s570
      // Predicated region
      $region41: #{unet_block.1} parent=39 // pred_check
        %p572 = pneg %p144
      $region42: #{unet_block.1} parent=39 // pred_check_branch
        %574 = sbr.rel (%p572) target = $region44
      $region43: #{unet_block.1} parent=39 // pred_region
        %s575 = smul.u32 2, %s16
      $region44: #{unet_block.1} parent=39 // pred_fallthru
        _
    $region40: #{unet_block.1} parent=5 // pred_fallthru
      _
    %p576 = scmp.le.s32.totalorder 2, %s11
    // Predicated region
    $region45: #{unet_block.1} parent=5 // pred_check
      %p577 = pneg %p576
    $region46: #{unet_block.1} parent=5 // pred_check_branch
      %579 = sbr.rel (%p577) target = $region48
    $region47: #{unet_block.1} parent=5 // pred_region
      %s580 = ssub.s32 %s11, 2
      // Predicated region
      $region49: #{unet_block.1} parent=47 // pred_check
        %p581 = pneg %p150
      $region50: #{unet_block.1} parent=47 // pred_check_branch
        %583 = sbr.rel (%p581) target = $region52
      $region51: #{unet_block.1} parent=47 // pred_region
        %s584 = smul.u32 2, %s17
        %p585 = scmp.lt.s32.totalorder %s584, 3
        %s586 = scalar_select %p585, %s584, 3
        %s587 = smul.addr %s586, 8
        %s588 = scalar_lea.vmem %s5, %s587
      $region52: #{unet_block.1} parent=47 // pred_fallthru
        _
    $region48: #{unet_block.1} parent=5 // pred_fallthru
      _
  $region6: #{unet_block.1} parent=0 // loop_footer
    %s15 = sadd.s32 1, %s11
  $region7: #{unet_block.1} parent=0 // loop_footer_branch
    %10 = sbr.rel target = $region3
  $region8: #{unet_block.1} parent=0 // loop_exit
    _

</llo_original>
